<compile_context>
chip_gen: v7x
topology: tpu7x:2x2x1
jax: 0.10.0
libtpu: 0.0.40
codegen_flags: <defaults>
</compile_context>

<pallas_src>
from functools import partial

import jax
import jax.numpy as jnp
from jax import lax
from jax.experimental import pallas as pl
from jax.experimental.pallas import tpu as pltpu

OUT_F = 10     # true output feature count
OUT_PAD = 16   # output features padded to a sublane multiple (8)
HID_PAD = 32   # fused hidden features (30) padded to a sublane multiple (8)


def _round_up(n, m):
    return ((n + m - 1) // m) * m


def _pad_to(a, shape):
    return jnp.pad(a, [(0, s - d) for d, s in zip(a.shape, shape)])


def _choose_tb(B, tb):
    tb = max(128, (int(tb) // 128) * 128)        # lane-aligned tile
    TB = min(tb, _round_up(B, 128))
    # v7x: if the whole batch fits in one grid step but spans more than one
    # lane-tile, split into two steps so both TensorCores get work.
    if B > 128 and pl.cdiv(B, TB) == 1:
        TB = _round_up(pl.cdiv(B, 2), 128)
    return TB


def mlp_kernel(xt_ref, w12t_ref, b12_ref, w3t_ref, b3_ref, o_ref):
    # xt_ref:   (2, TB)            input tile, batch on the lane axis
    # w12t_ref: (HID_PAD, 2)       fused input@hidden weight (transposed, padded)
    # b12_ref:  (HID_PAD, 1)       fused bias column (padded rows are zero)
    # w3t_ref:  (OUT_PAD, HID_PAD) output weight (transposed, zero-padded)
    # b3_ref:   (OUT_PAD, 1)       output bias column (padded rows are zero)
    # o_ref:    (OUT_PAD, TB)      output tile, batch on the lane axis
    x0 = xt_ref[0:1, :]                      # (1, TB): sublane-broadcasts below
    x1 = xt_ref[1:2, :]
    w12t = w12t_ref[...]
    # K=2 contraction as two VPU broadcast multiply-adds (an MXU pass would be
    # <2% utilized).  Padded hidden rows of w12t/b12 are zero, so h's padded
    # rows stay zero through the ReLU.
    h = w12t[:, 0:1] * x0 + w12t[:, 1:2] * x1 + b12_ref[...]   # (HID_PAD, TB)
    h = jnp.maximum(h, 0.0)                                    # ReLU
    # (16 x 32) @ (32 x TB) on the MXU; result lanes = batch -> lane-dense store.
    out = jnp.dot(w3t_ref[...], h, preferred_element_type=jnp.float32)
    o_ref[...] = (out + b3_ref[...]).astype(o_ref.dtype)


def prepare_params(params):
    """One-time fusion + padding of the torch-style parameters.

    params = (w1(2,20), b1(1,20), w2(20,30), b2(1,30), w3(30,10), b3(1,10))
    with weights stored as (in_features, out_features)."""
    w1, b1, w2, b2, w3, b3 = params
    hp = lax.Precision.HIGHEST
    # Exact algebraic fusion of the first two Linear layers (no nonlinearity
    # between them): h1 = (x@w1+b1)@w2+b2 = x@(w1@w2) + (b1@w2+b2).
    w12 = jnp.dot(w1, w2, precision=hp)                 # (2, 30)
    b12 = jnp.dot(b1, w2, precision=hp) + b2            # (1, 30)
    w12t = _pad_to(w12.T.astype(jnp.float32), (HID_PAD, 2))        # (32, 2)
    b12c = _pad_to(b12.T.astype(jnp.float32), (HID_PAD, 1))        # (32, 1)
    w3t = _pad_to(w3.T.astype(jnp.float32), (OUT_PAD, HID_PAD))    # (16, 32)
    b3c = _pad_to(b3.T.astype(jnp.float32), (OUT_PAD, 1))          # (16, 1)
    return (w12t, b12c, w3t, b3c)


@partial(jax.jit, static_argnames=("tb",))
def mlp_forward(x, kernel_params, *, tb=2048):
    """x: (B, 2) -> (B, 10).  kernel_params from prepare_params()."""
    w12t, b12c, w3t, b3c = kernel_params
    B = x.shape[0]
    TB = _choose_tb(B, tb)
    Bp = _round_up(B, TB)

    xt = x.astype(jnp.float32).T                     # (2, B): batch on lanes
    if Bp != B:                                      # only pad non-aligned batches
        xt = jnp.pad(xt, ((0, 0), (0, Bp - B)))

    const = lambda i: (0, 0)                         # weights stay VMEM-resident
    out_t = pl.pallas_call(
        mlp_kernel,
        out_shape=jax.ShapeDtypeStruct((OUT_PAD, Bp), jnp.float32),
        grid=(Bp // TB,),
        in_specs=[
            pl.BlockSpec((2, TB), lambda i: (0, i)),     # activations (batch tiled)
            pl.BlockSpec(w12t.shape, const),
            pl.BlockSpec(b12c.shape, const),
            pl.BlockSpec(w3t.shape, const),
            pl.BlockSpec(b3c.shape, const),
        ],
        out_specs=pl.BlockSpec((OUT_PAD, TB), lambda i: (0, i)),
        compiler_params=pltpu.CompilerParams(
            dimension_semantics=("parallel",)),          # dual-TC on v7x
    )(xt, w12t, b12c, w3t, b3c)

    # Convenience slice back to the torch-style (B, 10) layout; perf-sensitive
    # consumers should use out_t (OUT_PAD, Bp) directly and skip this pass.
    return out_t[:OUT_F, :B].T


def init_params(key):
    """Deterministic synthetic parameters with torch.nn.Linear fan-in init,
    stored as (in, out) — the transpose of torch's (out, in)."""
    ks = jax.random.split(key, 6)

    def linear(kw, kb, fan_in, fan_out):
        bound = 1.0 / jnp.sqrt(fan_in)
        w = jax.random.uniform(kw, (fan_in, fan_out), jnp.float32, -bound, bound)
        b = jax.random.uniform(kb, (1, fan_out), jnp.float32, -bound, bound)
        return w, b

    w1, b1 = linear(ks[0], ks[1], 2, 20)
    w2, b2 = linear(ks[2], ks[3], 20, 30)
    w3, b3 = linear(ks[4], ks[5], 30, 10)
    return (w1, b1, w2, b2, w3, b3)


def mlp_reference(x, params):
    w1, b1, w2, b2, w3, b3 = params
    h = x @ w1 + b1
    h = jnp.maximum(h @ w2 + b2, 0.0)
    return h @ w3 + b3


if __name__ == "__main__":
    key = jax.random.PRNGKey(0)
    k_x, k_p = jax.random.split(key)
    params = init_params(k_p)
    kparams = prepare_params(params)          # fused/padded once, off the hot path

    # Case 1: tiny batch, single grid step (tile clamps to 128 lanes).
    x1 = jax.random.normal(k_x, (8, 2), jnp.float32)
    out1 = jax.block_until_ready(mlp_forward(x1, kparams))
    ref1 = mlp_reference(x1, params)
    assert out1.shape == (8, 10), out1.shape
    assert jnp.allclose(out1, ref1, atol=1e-4, rtol=1e-4), "mismatch (case 1)"

    # Case 2: non-aligned batch (29 rows) -> lane padding path.
    x2 = jax.random.normal(k_x, (29, 2), jnp.float32)
    out2 = jax.block_until_ready(mlp_forward(x2, kparams, tb=128))
    ref2 = mlp_reference(x2, params)
    assert out2.shape == (29, 10), out2.shape
    assert jnp.allclose(out2, ref2, atol=1e-4, rtol=1e-4), "mismatch (case 2)"

    # Case 3: multi-step grid (300 rows, 128-lane tile -> grid of 3).
    x3 = jax.random.normal(k_x, (300, 2), jnp.float32)
    out3 = jax.block_until_ready(mlp_forward(x3, kparams, tb=128))
    ref3 = mlp_reference(x3, params)
    assert out3.shape == (300, 10), out3.shape
    assert jnp.allclose(out3, ref3, atol=1e-4, rtol=1e-4), "mismatch (case 3)"

    print("KERNEL_OK")
</pallas_src>

<mosaic_0001>
module attributes {stable_mosaic.version = 11 : i64} {
  func.func @mlp_kernel(%arg0: i32, %arg1: memref<2x128xf32, #tpu.memory_space<vmem>>, %arg2: memref<32x2xf32, #tpu.memory_space<vmem>>, %arg3: memref<32x1xf32, #tpu.memory_space<vmem>>, %arg4: memref<16x32xf32, #tpu.memory_space<vmem>>, %arg5: memref<16x1xf32, #tpu.memory_space<vmem>>, %arg6: memref<16x128xf32, #tpu.memory_space<vmem>>) attributes {dimension_semantics = [#tpu.dimension_semantics<parallel>], iteration_bounds = array<i64: 1>, scalar_prefetch = 0 : i64, scratch_operands = 0 : i64, tpu.core_type = #tpu.core_type<tc>, window_params = [{transform_indices = @transform_0, window_bounds = array<i64: 2, 128>}, {pipeline_mode = #tpu.pipeline_mode<synchronous>, transform_indices = @transform_1, window_bounds = array<i64: 32, 2>}, {pipeline_mode = #tpu.pipeline_mode<synchronous>, transform_indices = @transform_2, window_bounds = array<i64: 32, 1>}, {pipeline_mode = #tpu.pipeline_mode<synchronous>, transform_indices = @transform_3, window_bounds = array<i64: 16, 32>}, {pipeline_mode = #tpu.pipeline_mode<synchronous>, transform_indices = @transform_4, window_bounds = array<i64: 16, 1>}, {transform_indices = @transform_5, window_bounds = array<i64: 16, 128>}]} {
    %c0 = arith.constant 0 : index
    %c0_0 = arith.constant 0 : index
    %0 = vector.load %arg1[%c0, %c0_0] : memref<2x128xf32, #tpu.memory_space<vmem>>, vector<1x128xf32>
    %c1 = arith.constant 1 : index
    %c0_1 = arith.constant 0 : index
    %1 = vector.load %arg1[%c1, %c0_1] : memref<2x128xf32, #tpu.memory_space<vmem>>, vector<1x128xf32>
    %c0_2 = arith.constant 0 : index
    %c0_3 = arith.constant 0 : index
    %2 = vector.load %arg2[%c0_2, %c0_3] : memref<32x2xf32, #tpu.memory_space<vmem>>, vector<32x2xf32>
    %3 = vector.extract_strided_slice %2 {offsets = [0, 0], sizes = [32, 1], strides = [1, 1]} : vector<32x2xf32> to vector<32x1xf32>
    %4 = vector.broadcast %3 : vector<32x1xf32> to vector<32x128xf32>
    %5 = vector.broadcast %0 : vector<1x128xf32> to vector<32x128xf32>
    %6 = arith.mulf %4, %5 : vector<32x128xf32>
    %7 = vector.extract_strided_slice %2 {offsets = [0, 1], sizes = [32, 1], strides = [1, 1]} : vector<32x2xf32> to vector<32x1xf32>
    %8 = vector.broadcast %7 : vector<32x1xf32> to vector<32x128xf32>
    %9 = vector.broadcast %1 : vector<1x128xf32> to vector<32x128xf32>
    %10 = arith.mulf %8, %9 : vector<32x128xf32>
    %11 = arith.addf %6, %10 : vector<32x128xf32>
    %c0_4 = arith.constant 0 : index
    %c0_5 = arith.constant 0 : index
    %12 = vector.load %arg3[%c0_4, %c0_5] : memref<32x1xf32, #tpu.memory_space<vmem>>, vector<32x1xf32>
    %13 = vector.broadcast %12 : vector<32x1xf32> to vector<32x128xf32>
    %14 = arith.addf %11, %13 : vector<32x128xf32>
    %cst = arith.constant 0.000000e+00 : f32
    %15 = vector.broadcast %cst : f32 to vector<32x128xf32>
    %16 = arith.maximumf %14, %15 : vector<32x128xf32>
    %c0_6 = arith.constant 0 : index
    %c0_7 = arith.constant 0 : index
    %17 = vector.load %arg4[%c0_6, %c0_7] : memref<16x32xf32, #tpu.memory_space<vmem>>, vector<16x32xf32>
    %cst_8 = arith.constant dense<0.000000e+00> : vector<16x128xf32>
    %18 = tpu.matmul %17, %16, %cst_8 {dimension_numbers = #tpu.dot_dimension_numbers<[1], [0], [0], [1], [0, 0, 1, 1], [], []>} : vector<16x32xf32>, vector<32x128xf32>, vector<16x128xf32> -> vector<16x128xf32>
    %c0_9 = arith.constant 0 : index
    %c0_10 = arith.constant 0 : index
    %19 = vector.load %arg5[%c0_9, %c0_10] : memref<16x1xf32, #tpu.memory_space<vmem>>, vector<16x1xf32>
    %20 = vector.broadcast %19 : vector<16x1xf32> to vector<16x128xf32>
    %21 = arith.addf %18, %20 : vector<16x128xf32>
    %c0_11 = arith.constant 0 : index
    %c0_12 = arith.constant 0 : index
    %22 = vector.load %arg6[%c0_11, %c0_12] : memref<16x128xf32, #tpu.memory_space<vmem>>, vector<16x128xf32>
    tpu.vector_store %arg6[%c0_11, %c0_12], %21 {strides = array<i32>} : memref<16x128xf32, #tpu.memory_space<vmem>>, vector<16x128xf32>,
    return
  }
  func.func @transform_0(%arg0: i32) -> (i32, i32) {
    %c0_i32 = arith.constant 0 : i32
    %c0_i32_0 = arith.constant 0 : i32
    return %c0_i32, %arg0 : i32, i32
  }
  func.func @transform_1(%arg0: i32) -> (i32, i32) {
    %c0_i32 = arith.constant 0 : i32
    %c0_i32_0 = arith.constant 0 : i32
    %c0_i32_1 = arith.constant 0 : i32
    return %c0_i32, %c0_i32_0 : i32, i32
  }
  func.func @transform_2(%arg0: i32) -> (i32, i32) {
    %c0_i32 = arith.constant 0 : i32
    %c0_i32_0 = arith.constant 0 : i32
    %c0_i32_1 = arith.constant 0 : i32
    return %c0_i32, %c0_i32_0 : i32, i32
  }
  func.func @transform_3(%arg0: i32) -> (i32, i32) {
    %c0_i32 = arith.constant 0 : i32
    %c0_i32_0 = arith.constant 0 : i32
    %c0_i32_1 = arith.constant 0 : i32
    return %c0_i32, %c0_i32_0 : i32, i32
  }
  func.func @transform_4(%arg0: i32) -> (i32, i32) {
    %c0_i32 = arith.constant 0 : i32
    %c0_i32_0 = arith.constant 0 : i32
    %c0_i32_1 = arith.constant 0 : i32
    return %c0_i32, %c0_i32_0 : i32, i32
  }
  func.func @transform_5(%arg0: i32) -> (i32, i32) {
    %c0_i32 = arith.constant 0 : i32
    %c0_i32_0 = arith.constant 0 : i32
    return %c0_i32, %arg0 : i32, i32
  }
}

</mosaic_0001>

<llo_original>
// kernel: mlp_forward.1
$region0: #{mlp_forward.1}
  #allocation0 [shape = 'u32[]', space=smem, size = 0x4, offset = 0x4, fixed_abs, tag = 'smem constant byte address 0x4 - core index']
  #allocation1 [shape = 'u32[144,128]{1,0:T(1,128)}', space=vmem, size = 0x12000, scoped, tag = 'internal scratch']
  %s0 = inlined_call_operand.vmem [shape: f32[2,128], index: 0, kind: input, shape index: {}]
  %s1 = inlined_call_operand.vmem [shape: f32[32,2], index: 1, kind: input, shape index: {}]
  %s2 = inlined_call_operand.vmem [shape: f32[32,1], index: 2, kind: input, shape index: {}]
  %s3 = inlined_call_operand.vmem [shape: f32[16,32], index: 3, kind: input, shape index: {}]
  %s4 = inlined_call_operand.vmem [shape: f32[16,1], index: 4, kind: input, shape index: {}]
  %s5 = inlined_call_operand.vmem [shape: f32[16,128], index: 5, kind: output, shape index: {}]
  %s6 = sld [smem:[#allocation0]]
  $region30: #{mlp_forward.1} parent=0
    _
  %s8 = ssub.s32 1, %s6
  %s9 = scalar_select 0, %s8, %s6
  // Predicated region
  $region2: #{mlp_forward.1} parent=0 // pred_check
    _
  $region3: #{mlp_forward.1} parent=0 // pred_check_branch
    %11 = sbr.rel (0) target = $region5
  $region4: #{mlp_forward.1} parent=0 // pred_region
    _
  $region5: #{mlp_forward.1} parent=0 // pred_fallthru
    _
  // Predicated region
  $region6: #{mlp_forward.1} parent=0 // pred_check
    _
  $region7: #{mlp_forward.1} parent=0 // pred_check_branch
    %13 = sbr.rel (0) target = $region9
  $region8: #{mlp_forward.1} parent=0 // pred_region
    _
  $region9: #{mlp_forward.1} parent=0 // pred_fallthru
    _
  // Predicated region
  $region10: #{mlp_forward.1} parent=0 // pred_check
    _
  $region11: #{mlp_forward.1} parent=0 // pred_check_branch
    %15 = sbr.rel (0) target = $region13
  $region12: #{mlp_forward.1} parent=0 // pred_region
    _
  $region13: #{mlp_forward.1} parent=0 // pred_fallthru
    _
  // Predicated region
  $region14: #{mlp_forward.1} parent=0 // pred_check
    _
  $region15: #{mlp_forward.1} parent=0 // pred_check_branch
    %17 = sbr.rel (0) target = $region17
  $region16: #{mlp_forward.1} parent=0 // pred_region
    _
  $region17: #{mlp_forward.1} parent=0 // pred_fallthru
    _
  // Predicated region
  $region18: #{mlp_forward.1} parent=0 // pred_check
    _
  $region19: #{mlp_forward.1} parent=0 // pred_check_branch
    %19 = sbr.rel (0) target = $region21
  $region20: #{mlp_forward.1} parent=0 // pred_region
    _
  $region21: #{mlp_forward.1} parent=0 // pred_fallthru
    _
  %v20 = vld [vmem:[%s0] sm:$0x1]
  %v21 = vld [vmem:[%s0 + $0x1] sm:$0x1]
  %v22 = vld [vmem:[%s1] sm:$0xff]
  %v23 = vld [vmem:[%s1 + $0x8] sm:$0xff]
  %v24 = vld [vmem:[%s1 + $0x10] sm:$0xff]
  %v25 = vld [vmem:[%s1 + $0x18] sm:$0xff]
  %27 = vset.pattern.permute.xlu0 0
  %28 = vperm.xlu0 %27, %v22
  %v29 = vpop.permute.xlu0 %28
  %32 = vset.pattern.permute.xlu0 0
  %33 = vperm.xlu0 %32, %v23
  %v34 = vpop.permute.xlu0 %33
  %37 = vset.pattern.permute.xlu0 0
  %38 = vperm.xlu0 %37, %v24
  %v39 = vpop.permute.xlu0 %38
  %42 = vset.pattern.permute.xlu0 0
  %43 = vperm.xlu0 %42, %v25
  %v44 = vpop.permute.xlu0 %43
  %v46 = vlaneseq
  %v47 = vshrl.u32 %v46, 7
  %v48 = vsub.s32 0, %v47
  %v49 = vrot.slane %v20, %v48
  %v50 = vmul.f32 %v29, %v49
  %v51 = vmul.f32 %v34, %v49
  %v52 = vmul.f32 %v39, %v49
  %v53 = vmul.f32 %v44, %v49
  %54 = vset.pattern.permute.xlu0 1
  %55 = vperm.xlu0 %54, %v22
  %v56 = vpop.permute.xlu0 %55
  %58 = vset.pattern.permute.xlu0 1
  %59 = vperm.xlu0 %58, %v23
  %v60 = vpop.permute.xlu0 %59
  %62 = vset.pattern.permute.xlu0 1
  %63 = vperm.xlu0 %62, %v24
  %v64 = vpop.permute.xlu0 %63
  %66 = vset.pattern.permute.xlu0 1
  %67 = vperm.xlu0 %66, %v25
  %v68 = vpop.permute.xlu0 %67
  %v70 = vlaneseq
  %v71 = vshrl.u32 %v70, 7
  %v72 = vsub.s32 0, %v71
  %v73 = vrot.slane %v21, %v72
  %v74 = vmul.f32 %v56, %v73
  %v75 = vmul.f32 %v60, %v73
  %v76 = vmul.f32 %v64, %v73
  %v77 = vmul.f32 %v68, %v73
  %v78 = vadd.f32 %v50, %v74
  %v79 = vadd.f32 %v51, %v75
  %v80 = vadd.f32 %v52, %v76
  %v81 = vadd.f32 %v53, %v77
  %v82 = vld [vmem:[%s2] sm:$0xff]
  %v83 = vld [vmem:[%s2 + $0x8] sm:$0xff]
  %v84 = vld [vmem:[%s2 + $0x10] sm:$0xff]
  %v85 = vld [vmem:[%s2 + $0x18] sm:$0xff]
  %87 = vset.pattern.permute.xlu0 0
  %88 = vperm.xlu0 %87, %v82
  %v89 = vpop.permute.xlu0 %88
  %92 = vset.pattern.permute.xlu0 0
  %93 = vperm.xlu0 %92, %v83
  %v94 = vpop.permute.xlu0 %93
  %97 = vset.pattern.permute.xlu0 0
  %98 = vperm.xlu0 %97, %v84
  %v99 = vpop.permute.xlu0 %98
  %102 = vset.pattern.permute.xlu0 0
  %103 = vperm.xlu0 %102, %v85
  %v104 = vpop.permute.xlu0 %103
  %v106 = vadd.f32 %v78, %v89
  %v107 = vadd.f32 %v79, %v94
  %v108 = vadd.f32 %v80, %v99
  %v109 = vadd.f32 %v81, %v104
  %v110 = vmax.f32 %v106, 0.0
  %v111 = vmax.f32 %v107, 0.0
  %v112 = vmax.f32 %v108, 0.0
  %v113 = vmax.f32 %v109, 0.0
  %v114 = vld [vmem:[%s3] sm:$0xff]
  %v115 = vld [vmem:[%s3 + $0x8] sm:$0xff]
  %v116 = vld [vmem:[%s4] sm:$0xff]
  %v117 = vld [vmem:[%s4 + $0x8] sm:$0xff]
  %119 = vset.pattern.permute.xlu0 0
  %120 = vperm.xlu0 %119, %v116
  %v121 = vpop.permute.xlu0 %120
  %124 = vset.pattern.permute.xlu0 0
  %125 = vperm.xlu0 %124, %v117
  %v126 = vpop.permute.xlu0 %125
  %vm128 = vcmask 261120
  %v130 = vsel %vm128, %v114, 0
  %v133 = vsel %vm128, %v115, 0
  %135 = vmatprep.subr.mxu0 0.0
  %136 = vmatpush1.msra.mxu0 %v110
  %137 = vmatprep.subr.mxu0 0.0
  %138 = vmatpush1.msra.mxu0 %v111
  %139 = vmatprep.subr.mxu0 0.0
  %140 = vmatpush1.msra.mxu0 %v112
  %141 = vmatprep.subr.mxu0 0.0
  %142 = vmatpush1.msra.mxu0 %v113
  %143 = vmatprep.subr.mxu0 0.0
  %144 = vmatpush1.msra.mxu0 0.0
  %145 = vmatprep.subr.mxu0 0.0
  %146 = vmatpush1.msra.mxu0 0.0
  %147 = vmatprep.subr.mxu0 0.0
  %148 = vmatpush1.msra.mxu0 0.0
  %149 = vmatprep.subr.mxu0 0.0
  %150 = vmatpush1.msra.mxu0 0.0
  %151 = vmatprep.subr.mxu0 0.0
  %152 = vmatpush1.msra.mxu0 0.0
  %153 = vmatprep.subr.mxu0 0.0
  %154 = vmatpush1.msra.mxu0 0.0
  %155 = vmatprep.subr.mxu0 0.0
  %156 = vmatpush1.msra.mxu0 0.0
  %157 = vmatprep.subr.mxu0 0.0
  %158 = vmatpush1.msra.mxu0 0.0
  %159 = vmatprep.subr.mxu0 0.0
  %160 = vmatpush1.msra.mxu0 0.0
  %161 = vmatprep.subr.mxu0 0.0
  %162 = vmatpush1.msra.mxu0 0.0
  %163 = vmatprep.subr.mxu0 0.0
  %164 = vmatpush1.msra.mxu0 0.0
  %165 = vmatprep.subr.mxu0 0.0
  %166 = vmatpush1.msra.mxu0 0.0
  %167 = vmatprep.subr.mxu0 0.0
  %168 = vmatpush1.msra.mxu0 0.0
  %169 = vmatprep.subr.mxu0 0.0
  %170 = vmatpush1.msra.mxu0 0.0
  %171 = vmatprep.subr.mxu0 0.0
  %172 = vmatpush1.msra.mxu0 0.0
  %173 = vmatprep.subr.mxu0 0.0
  %174 = vmatpush1.msra.mxu0 0.0
  %175 = vmatprep.subr.mxu0 0.0
  %176 = vmatpush1.msra.mxu0 0.0
  %177 = vmatprep.subr.mxu0 0.0
  %178 = vmatpush1.msra.mxu0 0.0
  %179 = vmatprep.subr.mxu0 0.0
  %180 = vmatpush1.msra.mxu0 0.0
  %181 = vmatprep.subr.mxu0 0.0
  %182 = vmatpush1.msra.mxu0 0.0
  %183 = vmatprep.subr.mxu0 0.0
  %184 = vmatpush1.msra.mxu0 0.0
  %185 = vmatprep.subr.mxu0 0.0
  %186 = vmatpush1.msra.mxu0 0.0
  %187 = vmatprep.subr.mxu0 0.0
  %188 = vmatpush1.msra.mxu0 0.0
  %189 = vmatprep.subr.mxu0 0.0
  %190 = vmatpush1.msra.mxu0 0.0
  %191 = vmatprep.subr.mxu0 0.0
  %192 = vmatpush1.msra.mxu0 0.0
  %193 = vmatprep.subr.mxu0 0.0
  %194 = vmatpush1.msra.mxu0 0.0
  %195 = vmatprep.subr.mxu0 0.0
  %196 = vmatpush1.msra.mxu0 0.0
  %197 = vmatprep.subr.mxu0 0.0
  %198 = vmatpush1.msra.mxu0 0.0
  %199 = vmatprep.mubr.f32.mxu0 0.0
  %200 = vmatmul.mubr.f32.gmra.mrb[0].mxu0 %v130
  %v201 = vpop.f32.mrb[0].mxu0
  %v202 = vadd.f32 %v121, %v201
  %v203 = vpop.f32.mrb[0].mxu0
  %204 = vmatprep.mubr.f32.mxu0 0.0
  %205 = vmatmul.mubr.f32.gmra.mrb[0].mxu0 %v133
  %v206 = vpop.f32.mrb[0].mxu0
  %v207 = vadd.f32 %v126, %v206
  %v208 = vpop.f32.mrb[0].mxu0
  %209 = vdwg.mxu0
  %210 = vst [vmem:[%s5] sm:$0xff] %v202
  %211 = vst [vmem:[%s5 + $0x8] sm:$0xff] %v207
  // Predicated region
  $region22: #{mlp_forward.1} parent=0 // pred_check
    _
  $region23: #{mlp_forward.1} parent=0 // pred_check_branch
    %213 = sbr.rel (0) target = $region25
  $region24: #{mlp_forward.1} parent=0 // pred_region
    _
  $region25: #{mlp_forward.1} parent=0 // pred_fallthru
    _
  // Predicated region
  $region26: #{mlp_forward.1} parent=0 // pred_check
    _
  $region27: #{mlp_forward.1} parent=0 // pred_check_branch
    %215 = sbr.rel (0) target = $region29
  $region28: #{mlp_forward.1} parent=0 // pred_region
    _
  $region29: #{mlp_forward.1} parent=0 // pred_fallthru
    _

</llo_original>
